<compile_context>
chip_gen: v7x
topology: tpu7x:2x2x1
jax: 0.10.0
libtpu: 0.0.40
codegen_flags: <defaults>
</compile_context>

<pallas_src>
import functools

import jax
import jax.numpy as jnp
from jax import lax
from jax.experimental import pallas as pl
from jax.experimental.pallas import tpu as pltpu


def get_same_padding(size, kernel, dilation, stride):
    return ((size - 1) * (stride - 1) + dilation * (kernel - 1)) // 2


def _adaptive_conv1d_kernel(w_ref, xm_ref, xh_ref, o_ref, xbuf_ref, *,
                            K, dilation, tile_t):
    """Per-(batch, time-tile) body: stage input window, K accumulating MXU dots."""
    # Stage the main tile + 128-wide halo contiguously in VMEM (two aligned
    # stores) so every conv-tap window is a plain slice of one buffer.
    xbuf_ref[:, 0:tile_t] = xm_ref[0]
    xbuf_ref[:, tile_t:tile_t + 128] = xh_ref[0]

    acc = None
    for k in range(K):                                   # static unroll over taps
        off = k * dilation
        part = jnp.dot(w_ref[0, k], xbuf_ref[:, off:off + tile_t],
                       preferred_element_type=jnp.float32)
        acc = part if acc is None else acc + part
    o_ref[0] = acc.astype(o_ref.dtype)


def _prepare_weights(weights, mod, kernel_mod, b, *, demod, eps, compute_dtype):
    """Per-batch blended / modulated / demodulated weights, done once in JAX."""
    n, dim_out, dim_in, K = weights.shape
    w32 = weights.astype(jnp.float32)
    if n > 1:
        attn = jax.nn.softmax(kernel_mod.astype(jnp.float32), axis=-1)   # (b, n)
        wb = jnp.einsum('bn,noik->boik', attn, w32)                      # (b, o, i, K)
    else:
        wb = jnp.broadcast_to(w32[0], (b, dim_out, dim_in, K))
    wb = wb * (mod.astype(jnp.float32)[:, None, :, None] + 1.0)
    if demod:
        denom = jnp.sum(wb * wb, axis=(2, 3), keepdims=True)             # (b, o, 1, 1)
        wb = wb * lax.rsqrt(jnp.maximum(denom, eps))
    # (b, o, i, K) -> (b, K, o, i): each tap is its own aligned (o, i) sub-block.
    return jnp.transpose(wb, (0, 3, 1, 2)).astype(compute_dtype)


def adaptive_conv1d_mod(weights, fmap, mod, kernel_mod=None, *, demod=True,
                        stride=1, dilation=1, eps=1e-8,
                        compute_dtype=jnp.bfloat16, tile_t=512):
    """Pallas equivalent of AdaptiveConv1DMod.forward (stride=1 path)."""
    num_kernels, dim_out, dim_in, K = weights.shape
    b, c, t = fmap.shape
    assert c == dim_in
    # TODO(synk): stride > 1 (subsampled taps) not implemented in the kernel.
    assert stride == 1, "only stride=1 (module default) is implemented"

    halo = dilation * (K - 1)
    # TODO(synk): receptive fields wider than 128 need a wider halo block.
    assert halo <= 128, "dilation * (kernel - 1) must be <= 128"

    adaptive = num_kernels > 1

    # PyTorch-forward batch broadcast of the modulations ('b ... -> (s b) ...').
    if mod.shape[0] != b:
        assert b % mod.shape[0] == 0, (b, mod.shape)
        mod = jnp.tile(mod, (b // mod.shape[0], 1))
    if adaptive:
        assert kernel_mod is not None and kernel_mod.size > 0
        if kernel_mod.shape[0] != b:
            assert b % kernel_mod.shape[0] == 0, (b, kernel_mod.shape)
            kernel_mod = jnp.tile(kernel_mod, (b // kernel_mod.shape[0], 1))
        assert kernel_mod.shape == (b, num_kernels)
    else:
        if kernel_mod is not None:
            assert kernel_mod.size == 0 or num_kernels > 1

    # Weight prep hoisted out of the per-tile kernel body (review item #1).
    w_prep = _prepare_weights(weights, mod, kernel_mod if adaptive else None, b,
                              demod=demod, eps=eps, compute_dtype=compute_dtype)

    pad = get_same_padding(t, K, dilation, stride)
    t_out = t + 2 * pad - halo                               # stride == 1

    # Lane-dense time tiling: TILE_T is a multiple of 128 (>= 128, <= tile_t).
    TILE_T = max(128, min(int(tile_t), pl.cdiv(t_out, 128) * 128))
    num_tiles = pl.cdiv(t_out, TILE_T)
    t_out_pad = num_tiles * TILE_T
    t_in_total = num_tiles * TILE_T + 128                    # main tiles + halo block

    # TODO(synk): the zero "same" padding (and the trailing crop to t_out) is still
    # materialized HBM-side; folding it into the tiled load/store with in-kernel
    # edge masks would save one input pass and one output copy.
    x_in = jnp.pad(fmap, ((0, 0), (0, 0), (pad, t_in_total - t - pad)))
    x_in = x_in.astype(compute_dtype)

    kb = TILE_T // 128

    kernel = functools.partial(_adaptive_conv1d_kernel,
                               K=K, dilation=dilation, tile_t=TILE_T)

    # Honest VMEM estimate: double-buffered blocks + staging scratch + f32 acc.
    cdt = jnp.dtype(compute_dtype).itemsize
    odt = jnp.dtype(fmap.dtype).itemsize
    vmem_need = (2 * K * dim_out * dim_in * cdt              # per-batch weights
                 + 2 * dim_in * TILE_T * cdt                 # main input tile
                 + 2 * dim_in * 128 * cdt                    # halo block
                 + 2 * dim_out * TILE_T * odt                # output tile
                 + dim_in * (TILE_T + 128) * cdt             # staging scratch
                 + dim_out * TILE_T * 4)                     # f32 accumulator
    try:
        phys_vmem = int(pltpu.get_tpu_info().vmem_capacity_bytes)
    except Exception:
        phys_vmem = 64 << 20                                 # v7x per-core (smallest)
    cap = max(phys_vmem - (12 << 20), 16 << 20)              # leave headroom
    vmem_limit = int(min(max(2 * vmem_need, 16 << 20), cap))

    flops = 2 * b * dim_out * dim_in * K * t_out
    bytes_accessed = (w_prep.size * w_prep.dtype.itemsize
                      + x_in.size * x_in.dtype.itemsize
                      + b * dim_out * t_out * odt)
    cost = pl.CostEstimate(flops=int(flops), transcendentals=0,
                           bytes_accessed=int(bytes_accessed))

    out = pl.pallas_call(
        kernel,
        out_shape=jax.ShapeDtypeStruct((b, dim_out, t_out_pad), fmap.dtype),
        grid=(b, num_tiles),
        in_specs=[
            # per-batch prepped weights: block index is constant along the inner
            # (time) axis, so the block is only re-DMA'd when the batch changes
            pl.BlockSpec((1, K, dim_out, dim_in), lambda bi, ti: (bi, 0, 0, 0)),
            # main time tile of the padded input
            pl.BlockSpec((1, dim_in, TILE_T), lambda bi, ti: (bi, 0, ti)),
            # 128-wide halo block taken from the start of the next tile
            pl.BlockSpec((1, dim_in, 128), lambda bi, ti: (bi, 0, (ti + 1) * kb)),
        ],
        out_specs=pl.BlockSpec((1, dim_out, TILE_T), lambda bi, ti: (bi, 0, ti)),
        scratch_shapes=[pltpu.VMEM((dim_in, TILE_T + 128), compute_dtype)],
        compiler_params=pltpu.CompilerParams(
            dimension_semantics=("parallel", "parallel"),
            vmem_limit_bytes=vmem_limit),
        cost_estimate=cost,
    )(w_prep, x_in, x_in)

    if t_out_pad != t_out:
        out = out[:, :, :t_out]
    return out


def reference_forward(weights, fmap, mod, kernel_mod=None, *,
                      demod=True, stride=1, dilation=1, eps=1e-8):
    """Pure-JAX re-implementation of the PyTorch forward, for verification."""
    n, o, i, K = weights.shape
    b, c, t = fmap.shape
    w = jnp.broadcast_to(weights[None].astype(jnp.float32), (b, n, o, i, K))
    if n > 1:
        attn = jax.nn.softmax(kernel_mod.astype(jnp.float32), axis=-1)
        w = jnp.sum(w * attn[:, :, None, None, None], axis=1)
    else:
        w = w[:, 0]
    w = w * (mod.astype(jnp.float32)[:, None, :, None] + 1.0)
    if demod:
        inv = lax.rsqrt(jnp.maximum(jnp.sum(w * w, axis=(2, 3), keepdims=True), eps))
        w = w * inv
    pad = get_same_padding(t, K, dilation, stride)
    ys = []
    for bi in range(b):  # groups=b grouped conv, done per batch element
        y = lax.conv_general_dilated(
            fmap[bi:bi + 1].astype(jnp.float32), w[bi],
            window_strides=(stride,), padding=[(pad, pad)],
            rhs_dilation=(dilation,),
            dimension_numbers=("NCH", "OIH", "NCH"))
        ys.append(y[0])
    return jnp.stack(ys).astype(fmap.dtype)


if __name__ == "__main__":
    key = jax.random.PRNGKey(0)
    b, dim, dim_out, t = 2, 8, 16, 32
    K, num_conv_kernels = 3, 4

    k_w, k_f, k_m, k_km = jax.random.split(key, 4)
    # Deterministic kaiming_normal_ (fan_in mode on the 4D param => dim_out*dim*K).
    fan_in = dim_out * dim * K
    std = (2.0 / fan_in) ** 0.5
    weights = jax.random.normal(
        k_w, (num_conv_kernels, dim_out, dim, K), jnp.float32) * std
    fmap = jax.random.normal(k_f, (b, dim, t), jnp.float32)
    mod = jax.random.normal(k_m, (b, dim), jnp.float32)
    kernel_mod = jax.random.normal(k_km, (b, num_conv_kernels), jnp.float32)

    ref = reference_forward(weights, fmap, mod, kernel_mod)

    # Exact-semantics check with the f32 MXU path.
    out_f32 = adaptive_conv1d_mod(weights, fmap, mod, kernel_mod,
                                  compute_dtype=jnp.float32)
    jax.block_until_ready(out_f32)
    assert out_f32.shape == ref.shape, (out_f32.shape, ref.shape)
    err_f32 = float(jnp.max(jnp.abs(out_f32 - ref)))
    assert err_f32 < 1e-4, f"f32 path max abs err {err_f32}"

    # Fast bf16-MXU path (default).
    out_bf16 = adaptive_conv1d_mod(weights, fmap, mod, kernel_mod)
    jax.block_until_ready(out_bf16)
    err_bf16 = float(jnp.max(jnp.abs(out_bf16 - ref)))
    assert err_bf16 < 1e-1, f"bf16 path max abs err {err_bf16}"

    # Non-adaptive (num_conv_kernels == 1) path.
    w1 = weights[:1]
    ref1 = reference_forward(w1, fmap, mod, None)
    out1 = adaptive_conv1d_mod(w1, fmap, mod, None, compute_dtype=jnp.float32)
    jax.block_until_ready(out1)
    err1 = float(jnp.max(jnp.abs(out1 - ref1)))
    assert err1 < 1e-4, f"non-adaptive max abs err {err1}"

    print("KERNEL_OK")
</pallas_src>

<mosaic_0001>
module attributes {stable_mosaic.version = 11 : i64} {
  func.func @_adaptive_conv1d_kernel(%arg0: i32, %arg1: i32, %arg2: memref<1x3x16x8xf32, #tpu.memory_space<vmem>>, %arg3: memref<1x8x128xf32, #tpu.memory_space<vmem>>, %arg4: memref<1x8x128xf32, #tpu.memory_space<vmem>>, %arg5: memref<1x16x128xf32, #tpu.memory_space<vmem>>, %arg6: memref<8x256xf32, #tpu.memory_space<vmem>>) attributes {dimension_semantics = [#tpu.dimension_semantics<parallel>, #tpu.dimension_semantics<parallel>], iteration_bounds = array<i64: 2, 1>, scalar_prefetch = 0 : i64, scratch_operands = 1 : i64, tpu.core_type = #tpu.core_type<tc>, window_params = [{transform_indices = @transform_0, window_bounds = array<i64: 1, 3, 16, 8>}, {transform_indices = @transform_1, window_bounds = array<i64: 1, 8, 128>}, {transform_indices = @transform_2, window_bounds = array<i64: 1, 8, 128>}, {transform_indices = @transform_3, window_bounds = array<i64: 1, 16, 128>}]} {
    %c0 = arith.constant 0 : index
    %c0_0 = arith.constant 0 : index
    %c0_1 = arith.constant 0 : index
    %0 = vector.load %arg3[%c0, %c0_0, %c0_1] : memref<1x8x128xf32, #tpu.memory_space<vmem>>, vector<1x8x128xf32>
    %1 = vector.shape_cast %0 : vector<1x8x128xf32> to vector<8x128xf32>
    %c0_2 = arith.constant 0 : index
    %c0_3 = arith.constant 0 : index
    %2 = vector.load %arg6[%c0_2, %c0_3] : memref<8x256xf32, #tpu.memory_space<vmem>>, vector<8x128xf32>
    tpu.vector_store %arg6[%c0_2, %c0_3], %1 {strides = array<i32>} : memref<8x256xf32, #tpu.memory_space<vmem>>, vector<8x128xf32>,
    %c0_4 = arith.constant 0 : index
    %c0_5 = arith.constant 0 : index
    %c0_6 = arith.constant 0 : index
    %3 = vector.load %arg4[%c0_4, %c0_5, %c0_6] : memref<1x8x128xf32, #tpu.memory_space<vmem>>, vector<1x8x128xf32>
    %4 = vector.shape_cast %3 : vector<1x8x128xf32> to vector<8x128xf32>
    %c0_7 = arith.constant 0 : index
    %c128 = arith.constant 128 : index
    %5 = vector.load %arg6[%c0_7, %c128] : memref<8x256xf32, #tpu.memory_space<vmem>>, vector<8x128xf32>
    tpu.vector_store %arg6[%c0_7, %c128], %4 {strides = array<i32>} : memref<8x256xf32, #tpu.memory_space<vmem>>, vector<8x128xf32>,
    %c0_8 = arith.constant 0 : index
    %c0_9 = arith.constant 0 : index
    %c0_10 = arith.constant 0 : index
    %c0_11 = arith.constant 0 : index
    %6 = vector.load %arg2[%c0_8, %c0_9, %c0_10, %c0_11] : memref<1x3x16x8xf32, #tpu.memory_space<vmem>>, vector<1x1x16x8xf32>
    %7 = vector.shape_cast %6 : vector<1x1x16x8xf32> to vector<16x8xf32>
    %c0_12 = arith.constant 0 : index
    %c0_13 = arith.constant 0 : index
    %8 = vector.load %arg6[%c0_12, %c0_13] : memref<8x256xf32, #tpu.memory_space<vmem>>, vector<8x128xf32>
    %cst = arith.constant dense<0.000000e+00> : vector<16x128xf32>
    %9 = tpu.matmul %7, %8, %cst {dimension_numbers = #tpu.dot_dimension_numbers<[1], [0], [0], [1], [0, 0, 1, 1], [], []>} : vector<16x8xf32>, vector<8x128xf32>, vector<16x128xf32> -> vector<16x128xf32>
    %c0_14 = arith.constant 0 : index
    %c1 = arith.constant 1 : index
    %c0_15 = arith.constant 0 : index
    %c0_16 = arith.constant 0 : index
    %10 = vector.load %arg2[%c0_14, %c1, %c0_15, %c0_16] : memref<1x3x16x8xf32, #tpu.memory_space<vmem>>, vector<1x1x16x8xf32>
    %11 = vector.shape_cast %10 : vector<1x1x16x8xf32> to vector<16x8xf32>
    %c0_17 = arith.constant 0 : index
    %c1_18 = arith.constant 1 : index
    %12 = vector.load %arg6[%c0_17, %c1_18] : memref<8x256xf32, #tpu.memory_space<vmem>>, vector<8x128xf32>
    %cst_19 = arith.constant dense<0.000000e+00> : vector<16x128xf32>
    %13 = tpu.matmul %11, %12, %cst_19 {dimension_numbers = #tpu.dot_dimension_numbers<[1], [0], [0], [1], [0, 0, 1, 1], [], []>} : vector<16x8xf32>, vector<8x128xf32>, vector<16x128xf32> -> vector<16x128xf32>
    %14 = arith.addf %9, %13 : vector<16x128xf32>
    %c0_20 = arith.constant 0 : index
    %c2 = arith.constant 2 : index
    %c0_21 = arith.constant 0 : index
    %c0_22 = arith.constant 0 : index
    %15 = vector.load %arg2[%c0_20, %c2, %c0_21, %c0_22] : memref<1x3x16x8xf32, #tpu.memory_space<vmem>>, vector<1x1x16x8xf32>
    %16 = vector.shape_cast %15 : vector<1x1x16x8xf32> to vector<16x8xf32>
    %c0_23 = arith.constant 0 : index
    %c2_24 = arith.constant 2 : index
    %17 = vector.load %arg6[%c0_23, %c2_24] : memref<8x256xf32, #tpu.memory_space<vmem>>, vector<8x128xf32>
    %cst_25 = arith.constant dense<0.000000e+00> : vector<16x128xf32>
    %18 = tpu.matmul %16, %17, %cst_25 {dimension_numbers = #tpu.dot_dimension_numbers<[1], [0], [0], [1], [0, 0, 1, 1], [], []>} : vector<16x8xf32>, vector<8x128xf32>, vector<16x128xf32> -> vector<16x128xf32>
    %19 = arith.addf %14, %18 : vector<16x128xf32>
    %c0_26 = arith.constant 0 : index
    %c0_27 = arith.constant 0 : index
    %c0_28 = arith.constant 0 : index
    %20 = vector.load %arg5[%c0_26, %c0_27, %c0_28] : memref<1x16x128xf32, #tpu.memory_space<vmem>>, vector<1x16x128xf32>
    %21 = vector.shape_cast %20 : vector<1x16x128xf32> to vector<16x128xf32>
    %22 = vector.shape_cast %19 : vector<16x128xf32> to vector<1x16x128xf32>
    tpu.vector_store %arg5[%c0_26, %c0_27, %c0_28], %22 {strides = array<i32>} : memref<1x16x128xf32, #tpu.memory_space<vmem>>, vector<1x16x128xf32>,
    return
  }
  func.func @transform_0(%arg0: i32, %arg1: i32) -> (i32, i32, i32, i32) {
    %c0_i32 = arith.constant 0 : i32
    %c0_i32_0 = arith.constant 0 : i32
    %c0_i32_1 = arith.constant 0 : i32
    %c0_i32_2 = arith.constant 0 : i32
    return %arg0, %c0_i32, %c0_i32_0, %c0_i32_1 : i32, i32, i32, i32
  }
  func.func @transform_1(%arg0: i32, %arg1: i32) -> (i32, i32, i32) {
    %c0_i32 = arith.constant 0 : i32
    %c0_i32_0 = arith.constant 0 : i32
    return %arg0, %c0_i32, %arg1 : i32, i32, i32
  }
  func.func @transform_2(%arg0: i32, %arg1: i32) -> (i32, i32, i32) {
    %c1_i32 = arith.constant 1 : i32
    %0 = arith.addi %arg1, %c1_i32 : i32
    %c1_i32_0 = arith.constant 1 : i32
    %1 = arith.muli %0, %c1_i32_0 : i32
    %c0_i32 = arith.constant 0 : i32
    %c0_i32_1 = arith.constant 0 : i32
    return %arg0, %c0_i32, %1 : i32, i32, i32
  }
  func.func @transform_3(%arg0: i32, %arg1: i32) -> (i32, i32, i32) {
    %c0_i32 = arith.constant 0 : i32
    %c0_i32_0 = arith.constant 0 : i32
    return %arg0, %c0_i32, %arg1 : i32, i32, i32
  }
}

</mosaic_0001>

<llo_original>
// kernel: tpu_custom_call.1
$region0: #{tpu_custom_call.1}
  #allocation0 [shape = 'u32[]', space=smem, size = 0x4, offset = 0x4, fixed_abs, tag = 'smem constant byte address 0x4 - core index']
  #allocation1 [shape = 'u32[144,128]{1,0:T(1,128)}', space=vmem, size = 0x12000, scoped, tag = 'internal scratch']
  #allocation2 [shape = 'f32[8,256]{1,0:T(8,128)}', space=vmem, size = 0x2000, scoped, tag = 'scratch operand']
  %s0 = inlined_call_operand.vmem [shape: f32[2,3,16,8], index: 0, kind: input, shape index: {}]
  %s1 = inlined_call_operand.vmem [shape: f32[2,8,256], index: 1, kind: input, shape index: {}]
  %s2 = inlined_call_operand.vmem [shape: f32[2,8,256], index: 2, kind: input, shape index: {}]
  %s3 = inlined_call_operand.hbm [shape: f32[2,16,128], index: 3, kind: output, shape index: {}]
  %s4 = sld [smem:[#allocation0]]
  $region45: #{tpu_custom_call.1} parent=0
    _
  %s6 = ssub.s32 1, %s4
  %s7 = scalar_select 0, %s6, %s4
  $region1: #{tpu_custom_call.1} parent=0
    #allocation3 [shape = 'u8[16384]{0}', space=vmem, size = 0x4000, scoped, tag = 'output window, operand 0']
    #allocation4 [shape = 's32[2]{0}', space=sflag, size = 0x8, scoped, tag = 'scoped memory for tpu_custom_call.1']
    %8 = vsyncpa [#allocation4], 0
    %s9 = scalar_lea.sflag [#allocation4], 1
    %10 = vsyncpa %s9, 0
    loop: start=0, step=1, limit=4
    $region2: #{tpu_custom_call.1} parent=1 // loop_pre_header
      _
    $region3: #{tpu_custom_call.1} parent=1 // loop_header
      %s12 = sphi 0, %s16
      %p13 = scmp.ge.s32.totalorder %s12, 4
      %s19 = sphi 0, %s31
      %s20 = sphi 0, %s27
      %s21 = sphi 0, %s19
      %s22 = sphi 0, %s20
      %s23 = sphi 0, %s21
      %s24 = sphi 0, %s22
      %s34 = sphi 0, %s36
      %s37 = sphi 0, %s34
      %s38 = sphi 0, %s37
      %s54 = sphi 0, %s38
      %s62 = sphi 0, %s64
      %s65 = sphi 0, %s62
      %s66 = sphi 0, %s65
      %s82 = sphi 0, %s66
      %s92 = sphi 0, %s94
      %s95 = sphi 0, %s92
      %s96 = sphi 0, %s95
      %s112 = sphi 0, %s96
      %s120 = sphi 0, %s122
      %s123 = sphi 0, %s120
      %s124 = sphi 0, %s123
      %s140 = sphi 0, %s124
    $region4: #{tpu_custom_call.1} parent=1 // loop_header_branch
      %15 = sbr.rel (%p13) target = $region8
    $region5: #{tpu_custom_call.1} parent=1 // loop_body
      %s17 = ssub.s32 %s12, 1
      %s18 = ssub.s32 %s12, 2
      %s25 = sadd.s32 1, %s20
      %p26 = scmp.ge.s32.totalorder %s25, 1
      %s27 = scalar_select %p26, 0, %s25
      %s28 = sadd.s32 1, %s19
      %s29 = scalar_select %p26, %s28, %s19
      %p30 = scmp.ge.s32.totalorder %s29, 2
      %s31 = scalar_select %p30, 0, %s29
      %s32 = ssub.s32 %s19, %s31
      %p33 = scmp.eq.s32.totalorder %s32, 0
      %s35 = sadd.s32 %s34, 1
      %s36 = scalar_select %p33, %s34, %s35
      %p39 = pneg %p33
      %p40 = scmp.eq.s32.totalorder %s12, 1
      %p41 = por %p39, %p40
      %p42 = scmp.ne.s32.totalorder %s34, %s37
      %p43 = scmp.eq.s32.totalorder %s12, 0
      %p44 = por %p42, %p43
      %p45 = scmp.ne.s32.totalorder %s34, %s37
      %p46 = scmp.eq.s32.totalorder %s17, 1
      %p47 = por %p45, %p46
      %p48 = scmp.ne.s32.totalorder %s37, %s38
      %p49 = scmp.eq.s32.totalorder %s17, 0
      %p50 = por %p48, %p49
      %p51 = scmp.ne.s32.totalorder %s37, %s38
      %p52 = scmp.eq.s32.totalorder %s18, 1
      %p53 = por %p51, %p52
      %p55 = scmp.ne.s32.totalorder %s38, %s54
      %p56 = scmp.eq.s32.totalorder %s18, 0
      %p57 = por %p55, %p56
      %s58 = ssub.s32 %s19, %s31
      %s59 = ssub.s32 %s20, %s27
      %s60 = sor.u32 %s58, %s59
      %p61 = scmp.eq.s32.totalorder %s60, 0
      %s63 = sadd.s32 %s62, 1
      %s64 = scalar_select %p61, %s62, %s63
      %p67 = pneg %p61
      %p68 = scmp.eq.s32.totalorder %s12, 1
      %p69 = por %p67, %p68
      %p70 = scmp.ne.s32.totalorder %s62, %s65
      %p71 = scmp.eq.s32.totalorder %s12, 0
      %p72 = por %p70, %p71
      %p73 = scmp.ne.s32.totalorder %s62, %s65
      %p74 = scmp.eq.s32.totalorder %s17, 1
      %p75 = por %p73, %p74
      %p76 = scmp.ne.s32.totalorder %s65, %s66
      %p77 = scmp.eq.s32.totalorder %s17, 0
      %p78 = por %p76, %p77
      %p79 = scmp.ne.s32.totalorder %s65, %s66
      %p80 = scmp.eq.s32.totalorder %s18, 1
      %p81 = por %p79, %p80
      %p83 = scmp.ne.s32.totalorder %s66, %s82
      %p84 = scmp.eq.s32.totalorder %s18, 0
      %p85 = por %p83, %p84
      %s86 = sadd.s32 %s20, 1
      %s87 = sadd.s32 %s27, 1
      %s88 = ssub.s32 %s19, %s31
      %s89 = ssub.s32 %s86, %s87
      %s90 = sor.u32 %s88, %s89
      %p91 = scmp.eq.s32.totalorder %s90, 0
      %s93 = sadd.s32 %s92, 1
      %s94 = scalar_select %p91, %s92, %s93
      %p97 = pneg %p91
      %p98 = scmp.eq.s32.totalorder %s12, 1
      %p99 = por %p97, %p98
      %p100 = scmp.ne.s32.totalorder %s92, %s95
      %p101 = scmp.eq.s32.totalorder %s12, 0
      %p102 = por %p100, %p101
      %p103 = scmp.ne.s32.totalorder %s92, %s95
      %p104 = scmp.eq.s32.totalorder %s17, 1
      %p105 = por %p103, %p104
      %p106 = scmp.ne.s32.totalorder %s95, %s96
      %p107 = scmp.eq.s32.totalorder %s17, 0
      %p108 = por %p106, %p107
      %p109 = scmp.ne.s32.totalorder %s95, %s96
      %p110 = scmp.eq.s32.totalorder %s18, 1
      %p111 = por %p109, %p110
      %p113 = scmp.ne.s32.totalorder %s96, %s112
      %p114 = scmp.eq.s32.totalorder %s18, 0
      %p115 = por %p113, %p114
      %s116 = ssub.s32 %s19, %s31
      %s117 = ssub.s32 %s20, %s27
      %s118 = sor.u32 %s116, %s117
      %p119 = scmp.eq.s32.totalorder %s118, 0
      %s121 = sadd.s32 %s120, 1
      %s122 = scalar_select %p119, %s120, %s121
      %p125 = pneg %p119
      %p126 = scmp.eq.s32.totalorder %s12, 1
      %p127 = por %p125, %p126
      %p128 = scmp.ne.s32.totalorder %s120, %s123
      %p129 = scmp.eq.s32.totalorder %s12, 0
      %p130 = por %p128, %p129
      %p131 = scmp.ne.s32.totalorder %s120, %s123
      %p132 = scmp.eq.s32.totalorder %s17, 1
      %p133 = por %p131, %p132
      %p134 = scmp.ne.s32.totalorder %s123, %s124
      %p135 = scmp.eq.s32.totalorder %s17, 0
      %p136 = por %p134, %p135
      %p137 = scmp.ne.s32.totalorder %s123, %s124
      %p138 = scmp.eq.s32.totalorder %s18, 1
      %p139 = por %p137, %p138
      %p141 = scmp.ne.s32.totalorder %s124, %s140
      %p142 = scmp.eq.s32.totalorder %s18, 0
      %p143 = por %p141, %p142
      %p144 = scmp.le.s32.totalorder 1, %s12
      %p145 = scmp.lt.s32.totalorder %s12, 3
      %p146 = pnand %p144, %p145
      %p147 = pneg %p146
      // Predicated region
      $region9: #{tpu_custom_call.1} parent=5 // pred_check
        _
      $region10: #{tpu_custom_call.1} parent=5 // pred_check_branch
        %149 = sbr.rel (%p146) target = $region12
      $region11: #{tpu_custom_call.1} parent=5 // pred_region
        %s150 = ssub.s32 %s12, 1
      $region12: #{tpu_custom_call.1} parent=5 // pred_fallthru
        _
      %p151 = scmp.lt.s32.totalorder %s12, 2
      // Predicated region
      $region13: #{tpu_custom_call.1} parent=5 // pred_check
        %p152 = pneg %p151
      $region14: #{tpu_custom_call.1} parent=5 // pred_check_branch
        %154 = sbr.rel (%p152) target = $region16
      $region15: #{tpu_custom_call.1} parent=5 // pred_region
        // Predicated region
        $region17: #{tpu_custom_call.1} parent=15 // pred_check
          %p155 = pneg %p44
        $region18: #{tpu_custom_call.1} parent=15 // pred_check_branch
          %157 = sbr.rel (%p155) target = $region20
        $region19: #{tpu_custom_call.1} parent=15 // pred_region
          %p158 = scmp.lt.s32.totalorder %s19, 1
          %s159 = scalar_select %p158, %s19, 1
          %s160 = smul.addr %s159, 6
          %s161 = smul.addr %s160, 8
          %s162 = scalar_lea.vmem %s0, %s161
        $region20: #{tpu_custom_call.1} parent=15 // pred_fallthru
          _
        // Predicated region
        $region21: #{tpu_custom_call.1} parent=15 // pred_check
          %p163 = pneg %p72
        $region22: #{tpu_custom_call.1} parent=15 // pred_check_branch
          %165 = sbr.rel (%p163) target = $region24
        $region23: #{tpu_custom_call.1} parent=15 // pred_region
          %p166 = scmp.lt.s32.totalorder %s19, 1
          %s167 = scalar_select %p166, %s19, 1
          %p168 = scmp.lt.s32.totalorder %s20, 1
          %s169 = scalar_select %p168, %s20, 1
          %s170 = smul.addr %s167, 2
          %s171 = sadd.s32 %s169, %s170
          %s172 = smul.addr %s171, 8
          %s173 = scalar_lea.vmem %s1, %s172
        $region24: #{tpu_custom_call.1} parent=15 // pred_fallthru
          _
        // Predicated region
        $region25: #{tpu_custom_call.1} parent=15 // pred_check
          %p174 = pneg %p102
        $region26: #{tpu_custom_call.1} parent=15 // pred_check_branch
          %176 = sbr.rel (%p174) target = $region28
        $region27: #{tpu_custom_call.1} parent=15 // pred_region
          %s177 = sadd.s32 %s20, 1
          %p178 = scmp.lt.s32.totalorder %s19, 1
          %s179 = scalar_select %p178, %s19, 1
          %p180 = scmp.lt.s32.totalorder %s177, 1
          %s181 = scalar_select %p180, %s177, 1
          %s182 = smul.addr %s179, 2
          %s183 = sadd.s32 %s181, %s182
          %s184 = smul.addr %s183, 8
          %s185 = scalar_lea.vmem %s2, %s184
          %s186 = sadd.s32 %s20, 1
        $region28: #{tpu_custom_call.1} parent=15 // pred_fallthru
          _
      $region16: #{tpu_custom_call.1} parent=5 // pred_fallthru
        _
      %p187 = scmp.le.s32.totalorder 1, %s12
      %p188 = scmp.lt.s32.totalorder %s12, 3
      %p189 = pnand %p187, %p188
      %p190 = pneg %p189
      // Predicated region
      $region29: #{tpu_custom_call.1} parent=5 // pred_check
        _
      $region30: #{tpu_custom_call.1} parent=5 // pred_check_branch
        %192 = sbr.rel (%p189) target = $region32
      $region31: #{tpu_custom_call.1} parent=5 // pred_region
        %s193 = ssub.s32 %s12, 1
        %p194 = scmp.lt.s32.totalorder %s21, 1
        %s195 = scalar_select %p194, %s21, 1
        %s196 = smul.addr %s195, 6
        %s197 = smul.addr %s196, 8
        %s198 = scalar_lea.vmem %s0, %s197
        %p199 = pneg %p50
        %p200 = pneg %p47
        %p201 = scmp.lt.s32.totalorder %s21, 1
        %s202 = scalar_select %p201, %s21, 1
        %p203 = scmp.lt.s32.totalorder %s22, 1
        %s204 = scalar_select %p203, %s22, 1
        %s205 = smul.addr %s202, 2
        %s206 = sadd.s32 %s204, %s205
        %s207 = smul.addr %s206, 8
        %s208 = scalar_lea.vmem %s1, %s207
        %p209 = pneg %p78
        %p210 = pneg %p75
        %s211 = sadd.s32 %s22, 1
        %p212 = scmp.lt.s32.totalorder %s21, 1
        %s213 = scalar_select %p212, %s21, 1
        %p214 = scmp.lt.s32.totalorder %s211, 1
        %s215 = scalar_select %p214, %s211, 1
        %s216 = smul.addr %s213, 2
        %s217 = sadd.s32 %s215, %s216
        %s218 = smul.addr %s217, 8
        %s219 = scalar_lea.vmem %s2, %s218
        %p220 = pneg %p108
        %p221 = pneg %p105
        %p222 = pneg %p136
        %p223 = pneg %p133
        %s224 = sand.u32 %s123, 1
        %s225 = scalar_lea.sflag [#allocation4], %s224
        %s226 = sand.u32 %s123, 1
        %s227 = smul.addr %s226, 16
        %s228 = scalar_lea.vmem [#allocation3], %s227
        %p229 = scmp.lt.s32.totalorder %s21, 1
        %s230 = scalar_select %p229, %s21, 1
        %s231 = smul.addr %s230, 6
        %s232 = smul.addr %s231, 8
        %s233 = scalar_lea.vmem %s0, %s232
        %p234 = scmp.lt.s32.totalorder %s21, 1
        %s235 = scalar_select %p234, %s21, 1
        %p236 = scmp.lt.s32.totalorder %s22, 1
        %s237 = scalar_select %p236, %s22, 1
        %s238 = smul.addr %s235, 2
        %s239 = sadd.s32 %s237, %s238
        %s240 = smul.addr %s239, 8
        %s241 = scalar_lea.vmem %s1, %s240
        %s242 = sadd.s32 %s22, 1
        %p243 = scmp.lt.s32.totalorder %s21, 1
        %s244 = scalar_select %p243, %s21, 1
        %p245 = scmp.lt.s32.totalorder %s242, 1
        %s246 = scalar_select %p245, %s242, 1
        %s247 = smul.addr %s244, 2
        %s248 = sadd.s32 %s246, %s247
        %s249 = smul.addr %s248, 8
        %s250 = scalar_lea.vmem %s2, %s249
        %s251 = sadd.s32 %s22, 1
        %v252 = vld [vmem:[%s241] sm:$0xff]
        %253 = vst [vmem:[#allocation2] sm:$0xff] %v252
        %v254 = vld [vmem:[%s250] sm:$0xff]
        %255 = vst [vmem:[#allocation2 + $0x8] sm:$0xff] %v254
        %v256 = vld [vmem:[%s233] sm:$0xff]
        %v257 = vld [vmem:[%s233 + $0x8] sm:$0xff]
        %v258 = vld [vmem:[#allocation2] sm:$0xff]
        %s259 = scalar_lea.vmem %s233, 16
        %v260 = vld [vmem:[%s259] sm:$0xff]
        %v261 = vld [vmem:[%s259 + $0x8] sm:$0xff]
        %v262 = vld [vmem:[#allocation2] sm:$0xff]
        %v263 = vld [vmem:[#allocation2 + $0x8] sm:$0xff]
        %266 = vrot.lane.b32.xlu0 %v262, 127
        %v267 = vpop.permute.xlu0 %266
        %268 = vrot.lane.b32.xlu0 %v263, 127
        %v269 = vpop.permute.xlu0 %268
        %vm270 = vcmask 1039360
        %v271 = vsel %vm270, %v267, %v269
        %vm273 = vcmask 64512
        %v275 = vsel %vm273, %v260, 0
        %v278 = vsel %vm273, %v261, 0
        %280 = vmatprep.subr.mxu0 0.0
        %281 = vmatpush1.msra.mxu0 %v271
        %282 = vmatprep.subr.mxu0 0.0
        %283 = vmatpush1.msra.mxu0 0.0
        %284 = vmatprep.subr.mxu0 0.0
        %285 = vmatpush1.msra.mxu0 0.0
        %286 = vmatprep.subr.mxu0 0.0
        %287 = vmatpush1.msra.mxu0 0.0
        %288 = vmatprep.subr.mxu0 0.0
        %289 = vmatpush1.msra.mxu0 0.0
        %290 = vmatprep.subr.mxu0 0.0
        %291 = vmatpush1.msra.mxu0 0.0
        %292 = vmatprep.subr.mxu0 0.0
        %293 = vmatpush1.msra.mxu0 0.0
        %294 = vmatprep.subr.mxu0 0.0
        %295 = vmatpush1.msra.mxu0 0.0
        %296 = vmatprep.subr.mxu0 0.0
        %297 = vmatpush1.msra.mxu0 0.0
        %298 = vmatprep.subr.mxu0 0.0
        %299 = vmatpush1.msra.mxu0 0.0
        %300 = vmatprep.subr.mxu0 0.0
        %301 = vmatpush1.msra.mxu0 0.0
        %302 = vmatprep.subr.mxu0 0.0
        %303 = vmatpush1.msra.mxu0 0.0
        %304 = vmatprep.subr.mxu0 0.0
        %305 = vmatpush1.msra.mxu0 0.0
        %306 = vmatprep.subr.mxu0 0.0
        %307 = vmatpush1.msra.mxu0 0.0
        %308 = vmatprep.subr.mxu0 0.0
        %309 = vmatpush1.msra.mxu0 0.0
        %310 = vmatprep.subr.mxu0 0.0
        %311 = vmatpush1.msra.mxu0 0.0
        %312 = vmatprep.subr.mxu0 0.0
        %313 = vmatpush1.msra.mxu0 0.0
        %314 = vmatprep.subr.mxu0 0.0
        %315 = vmatpush1.msra.mxu0 0.0
        %316 = vmatprep.subr.mxu0 0.0
        %317 = vmatpush1.msra.mxu0 0.0
        %318 = vmatprep.subr.mxu0 0.0
        %319 = vmatpush1.msra.mxu0 0.0
        %320 = vmatprep.subr.mxu0 0.0
        %321 = vmatpush1.msra.mxu0 0.0
        %322 = vmatprep.subr.mxu0 0.0
        %323 = vmatpush1.msra.mxu0 0.0
        %324 = vmatprep.subr.mxu0 0.0
        %325 = vmatpush1.msra.mxu0 0.0
        %326 = vmatprep.subr.mxu0 0.0
        %327 = vmatpush1.msra.mxu0 0.0
        %328 = vmatprep.subr.mxu0 0.0
        %329 = vmatpush1.msra.mxu0 0.0
        %330 = vmatprep.subr.mxu0 0.0
        %331 = vmatpush1.msra.mxu0 0.0
        %332 = vmatprep.subr.mxu0 0.0
        %333 = vmatpush1.msra.mxu0 0.0
        %334 = vmatprep.subr.mxu0 0.0
        %335 = vmatpush1.msra.mxu0 0.0
        %336 = vmatprep.subr.mxu0 0.0
        %337 = vmatpush1.msra.mxu0 0.0
        %338 = vmatprep.subr.mxu0 0.0
        %339 = vmatpush1.msra.mxu0 0.0
        %340 = vmatprep.subr.mxu0 0.0
        %341 = vmatpush1.msra.mxu0 0.0
        %342 = vmatprep.subr.mxu0 0.0
        %343 = vmatpush1.msra.mxu0 0.0
        %344 = vmatprep.mubr.f32.mxu0 0.0
        %345 = vmatmul.mubr.f32.gmra.mrb[0].mxu0 %v275
        %v346 = vpop.f32.mrb[0].mxu0
        %v347 = vadd.f32 0.0, %v346
        %v348 = vpop.f32.mrb[0].mxu0
        %349 = vmatprep.mubr.f32.mxu0 0.0
        %350 = vmatmul.mubr.f32.gmra.mrb[0].mxu0 %v278
        %v351 = vpop.f32.mrb[0].mxu0
        %v352 = vadd.f32 0.0, %v351
        %v353 = vpop.f32.mrb[0].mxu0
        %354 = vdwg.mxu0
        %v356 = vsel %vm273, %v256, 0
        %v359 = vsel %vm273, %v257, 0
        %361 = vmatprep.subr.mxu0 0.0
        %362 = vmatpush1.msra.mxu0 %v258
        %363 = vmatprep.subr.mxu0 0.0
        %364 = vmatpush1.msra.mxu0 0.0
        %365 = vmatprep.subr.mxu0 0.0
        %366 = vmatpush1.msra.mxu0 0.0
        %367 = vmatprep.subr.mxu0 0.0
        %368 = vmatpush1.msra.mxu0 0.0
        %369 = vmatprep.subr.mxu0 0.0
        %370 = vmatpush1.msra.mxu0 0.0
        %371 = vmatprep.subr.mxu0 0.0
        %372 = vmatpush1.msra.mxu0 0.0
        %373 = vmatprep.subr.mxu0 0.0
        %374 = vmatpush1.msra.mxu0 0.0
        %375 = vmatprep.subr.mxu0 0.0
        %376 = vmatpush1.msra.mxu0 0.0
        %377 = vmatprep.subr.mxu0 0.0
        %378 = vmatpush1.msra.mxu0 0.0
        %379 = vmatprep.subr.mxu0 0.0
        %380 = vmatpush1.msra.mxu0 0.0
        %381 = vmatprep.subr.mxu0 0.0
        %382 = vmatpush1.msra.mxu0 0.0
        %383 = vmatprep.subr.mxu0 0.0
        %384 = vmatpush1.msra.mxu0 0.0
        %385 = vmatprep.subr.mxu0 0.0
        %386 = vmatpush1.msra.mxu0 0.0
        %387 = vmatprep.subr.mxu0 0.0
        %388 = vmatpush1.msra.mxu0 0.0
        %389 = vmatprep.subr.mxu0 0.0
        %390 = vmatpush1.msra.mxu0 0.0
        %391 = vmatprep.subr.mxu0 0.0
        %392 = vmatpush1.msra.mxu0 0.0
        %393 = vmatprep.subr.mxu0 0.0
        %394 = vmatpush1.msra.mxu0 0.0
        %395 = vmatprep.subr.mxu0 0.0
        %396 = vmatpush1.msra.mxu0 0.0
        %397 = vmatprep.subr.mxu0 0.0
        %398 = vmatpush1.msra.mxu0 0.0
        %399 = vmatprep.subr.mxu0 0.0
        %400 = vmatpush1.msra.mxu0 0.0
        %401 = vmatprep.subr.mxu0 0.0
        %402 = vmatpush1.msra.mxu0 0.0
        %403 = vmatprep.subr.mxu0 0.0
        %404 = vmatpush1.msra.mxu0 0.0
        %405 = vmatprep.subr.mxu0 0.0
        %406 = vmatpush1.msra.mxu0 0.0
        %407 = vmatprep.subr.mxu0 0.0
        %408 = vmatpush1.msra.mxu0 0.0
        %409 = vmatprep.subr.mxu0 0.0
        %410 = vmatpush1.msra.mxu0 0.0
        %411 = vmatprep.subr.mxu0 0.0
        %412 = vmatpush1.msra.mxu0 0.0
        %413 = vmatprep.subr.mxu0 0.0
        %414 = vmatpush1.msra.mxu0 0.0
        %415 = vmatprep.subr.mxu0 0.0
        %416 = vmatpush1.msra.mxu0 0.0
        %417 = vmatprep.subr.mxu0 0.0
        %418 = vmatpush1.msra.mxu0 0.0
        %419 = vmatprep.subr.mxu0 0.0
        %420 = vmatpush1.msra.mxu0 0.0
        %421 = vmatprep.subr.mxu0 0.0
        %422 = vmatpush1.msra.mxu0 0.0
        %423 = vmatprep.subr.mxu0 0.0
        %424 = vmatpush1.msra.mxu0 0.0
        %425 = vmatprep.mubr.f32.mxu0 0.0
        %426 = vmatmul.mubr.f32.gmra.mrb[0].mxu0 %v356
        %v427 = vpop.f32.mrb[0].mxu0
        %v428 = vadd.f32 %v347, %v427
        %v429 = vpop.f32.mrb[0].mxu0
        %430 = vmatprep.mubr.f32.mxu0 0.0
        %431 = vmatmul.mubr.f32.gmra.mrb[0].mxu0 %v359
        %v432 = vpop.f32.mrb[0].mxu0
        %v433 = vadd.f32 %v352, %v432
        %v434 = vpop.f32.mrb[0].mxu0
        %435 = vdwg.mxu0
        %s436 = scalar_lea.vmem %s233, 32
        %v437 = vld [vmem:[%s436] sm:$0xff]
        %v438 = vld [vmem:[%s436 + $0x8] sm:$0xff]
        %439 = vrot.lane.b32.xlu0 %v262, 126
        %v440 = vpop.permute.xlu0 %439
        %441 = vrot.lane.b32.xlu0 %v263, 126
        %v442 = vpop.permute.xlu0 %441
        %vm443 = vcmask 1031168
        %v444 = vsel %vm443, %v440, %v442
        %v447 = vsel %vm273, %v437, 0
        %v450 = vsel %vm273, %v438, 0
        %452 = vmatprep.subr.mxu0 0.0
        %453 = vmatpush1.msra.mxu0 %v444
        %454 = vmatprep.subr.mxu0 0.0
        %455 = vmatpush1.msra.mxu0 0.0
        %456 = vmatprep.subr.mxu0 0.0
        %457 = vmatpush1.msra.mxu0 0.0
        %458 = vmatprep.subr.mxu0 0.0
        %459 = vmatpush1.msra.mxu0 0.0
        %460 = vmatprep.subr.mxu0 0.0
        %461 = vmatpush1.msra.mxu0 0.0
        %462 = vmatprep.subr.mxu0 0.0
        %463 = vmatpush1.msra.mxu0 0.0
        %464 = vmatprep.subr.mxu0 0.0
        %465 = vmatpush1.msra.mxu0 0.0
        %466 = vmatprep.subr.mxu0 0.0
        %467 = vmatpush1.msra.mxu0 0.0
        %468 = vmatprep.subr.mxu0 0.0
        %469 = vmatpush1.msra.mxu0 0.0
        %470 = vmatprep.subr.mxu0 0.0
        %471 = vmatpush1.msra.mxu0 0.0
        %472 = vmatprep.subr.mxu0 0.0
        %473 = vmatpush1.msra.mxu0 0.0
        %474 = vmatprep.subr.mxu0 0.0
        %475 = vmatpush1.msra.mxu0 0.0
        %476 = vmatprep.subr.mxu0 0.0
        %477 = vmatpush1.msra.mxu0 0.0
        %478 = vmatprep.subr.mxu0 0.0
        %479 = vmatpush1.msra.mxu0 0.0
        %480 = vmatprep.subr.mxu0 0.0
        %481 = vmatpush1.msra.mxu0 0.0
        %482 = vmatprep.subr.mxu0 0.0
        %483 = vmatpush1.msra.mxu0 0.0
        %484 = vmatprep.subr.mxu0 0.0
        %485 = vmatpush1.msra.mxu0 0.0
        %486 = vmatprep.subr.mxu0 0.0
        %487 = vmatpush1.msra.mxu0 0.0
        %488 = vmatprep.subr.mxu0 0.0
        %489 = vmatpush1.msra.mxu0 0.0
        %490 = vmatprep.subr.mxu0 0.0
        %491 = vmatpush1.msra.mxu0 0.0
        %492 = vmatprep.subr.mxu0 0.0
        %493 = vmatpush1.msra.mxu0 0.0
        %494 = vmatprep.subr.mxu0 0.0
        %495 = vmatpush1.msra.mxu0 0.0
        %496 = vmatprep.subr.mxu0 0.0
        %497 = vmatpush1.msra.mxu0 0.0
        %498 = vmatprep.subr.mxu0 0.0
        %499 = vmatpush1.msra.mxu0 0.0
        %500 = vmatprep.subr.mxu0 0.0
        %501 = vmatpush1.msra.mxu0 0.0
        %502 = vmatprep.subr.mxu0 0.0
        %503 = vmatpush1.msra.mxu0 0.0
        %504 = vmatprep.subr.mxu0 0.0
        %505 = vmatpush1.msra.mxu0 0.0
        %506 = vmatprep.subr.mxu0 0.0
        %507 = vmatpush1.msra.mxu0 0.0
        %508 = vmatprep.subr.mxu0 0.0
        %509 = vmatpush1.msra.mxu0 0.0
        %510 = vmatprep.subr.mxu0 0.0
        %511 = vmatpush1.msra.mxu0 0.0
        %512 = vmatprep.subr.mxu0 0.0
        %513 = vmatpush1.msra.mxu0 0.0
        %514 = vmatprep.subr.mxu0 0.0
        %515 = vmatpush1.msra.mxu0 0.0
        %516 = vmatprep.mubr.f32.mxu0 0.0
        %517 = vmatmul.mubr.f32.gmra.mrb[0].mxu0 %v447
        %v518 = vpop.f32.mrb[0].mxu0
        %v519 = vadd.f32 0.0, %v518
        %v520 = vpop.f32.mrb[0].mxu0
        %521 = vmatprep.mubr.f32.mxu0 0.0
        %522 = vmatmul.mubr.f32.gmra.mrb[0].mxu0 %v450
        %v523 = vpop.f32.mrb[0].mxu0
        %v524 = vadd.f32 0.0, %v523
        %v525 = vpop.f32.mrb[0].mxu0
        %526 = vdwg.mxu0
        %v527 = vadd.f32 %v428, %v519
        %v528 = vadd.f32 %v433, %v524
        %529 = vst [vmem:[%s228] sm:$0xff] %v527
        %530 = vst [vmem:[%s228 + $0x8] sm:$0xff] %v528
        %s531 = sand.u32 %s123, 1
        %s532 = scalar_lea.sflag [#allocation4], %s531
        %s533 = sand.u32 %s123, 1
        %s534 = smul.addr %s533, 16
        %s535 = scalar_lea.vmem [#allocation3], %s534
        // Predicated region
        $region33: #{tpu_custom_call.1} parent=31 // pred_check
          %p536 = pneg %p133
        $region34: #{tpu_custom_call.1} parent=31 // pred_check_branch
          %538 = sbr.rel (%p536) target = $region36
        $region35: #{tpu_custom_call.1} parent=31 // pred_region
          %s540 = ssub.s32 256, 256
          %541 = vsyncadd %s532, %s540
          %s542 = smul.addr %s21, 2
          %s543 = sadd.s32 %s22, %s542
          %s544 = smul.addr %s543, 128
          %s545 = scalar_lea.hbm %s3, %s544
          %s546 = sshll.u32 %s535, 4
          %s547 = int_to_ptr.vmem [resolvable:$true] %s546
          %552 = dma.vmem_to_hbm [thread:$0]  %s547, 256, %s545, %s532, 128, 128, 8
        $region36: #{tpu_custom_call.1} parent=31 // pred_fallthru
          _
      $region32: #{tpu_custom_call.1} parent=5 // pred_fallthru
        _
      %p553 = scmp.le.s32.totalorder 2, %s12
      // Predicated region
      $region37: #{tpu_custom_call.1} parent=5 // pred_check
        %p554 = pneg %p553
      $region38: #{tpu_custom_call.1} parent=5 // pred_check_branch
        %556 = sbr.rel (%p554) target = $region40
      $region39: #{tpu_custom_call.1} parent=5 // pred_region
        %s557 = ssub.s32 %s12, 2
        // Predicated region
        $region41: #{tpu_custom_call.1} parent=39 // pred_check
          %p558 = pneg %p139
        $region42: #{tpu_custom_call.1} parent=39 // pred_check_branch
          %560 = sbr.rel (%p558) target = $region44
        $region43: #{tpu_custom_call.1} parent=39 // pred_region
          %s561 = sand.u32 %s124, 1
          %s562 = scalar_lea.sflag [#allocation4], %s561
          %s563 = sand.u32 %s124, 1
          %s564 = smul.addr %s563, 16
          %s565 = scalar_lea.vmem [#allocation3], %s564
          %566 = dma.done %s562, 256
        $region44: #{tpu_custom_call.1} parent=39 // pred_fallthru
          _
      $region40: #{tpu_custom_call.1} parent=5 // pred_fallthru
        _
    $region6: #{tpu_custom_call.1} parent=1 // loop_footer
      %s16 = sadd.s32 1, %s12
    $region7: #{tpu_custom_call.1} parent=1 // loop_footer_branch
      %11 = sbr.rel target = $region3
    $region8: #{tpu_custom_call.1} parent=1 // loop_exit
      _
    %567 = vsyncpa [#allocation4], 1
    %s568 = scalar_lea.sflag [#allocation4], 1
    %569 = vsyncpa %s568, 1

</llo_original>
